<compile_context>
chip_gen: v7x
topology: tpu7x:2x2x1
jax: 0.10.0
libtpu: 0.0.40
codegen_flags: <defaults>
</compile_context>

<pallas_src>
import functools
import math

import jax
import jax.numpy as jnp
from jax.experimental import pallas as pl
from jax.experimental.pallas import tpu as pltpu

VMEM_LIMIT = 48 * 1024 * 1024  # fits v7x (64 MiB physical) with double-buffer headroom


def _pick_tile(dim, candidates):
    """Largest candidate tile that exactly divides `dim`; otherwise the full dim."""
    for c in candidates:
        if c <= dim and dim % c == 0:
            return c
    return dim


# --------------------------------------------------------------------------
# Tiled, pipelined matmul: y = act(x @ w + b)
# --------------------------------------------------------------------------
def _linear_kernel(x_ref, w_ref, b_ref, o_ref, acc_ref, *, activation):
    @pl.when(pl.program_id(2) == 0)
    def _init():
        acc_ref[...] = jnp.zeros_like(acc_ref)

    # bf16 x bf16 -> f32 accumulation on the MXU.
    acc_ref[...] += jnp.dot(x_ref[...], w_ref[...],
                            preferred_element_type=jnp.float32)

    @pl.when(pl.program_id(2) == pl.num_programs(2) - 1)
    def _finalize():
        acc = acc_ref[...] + b_ref[...]          # f32 epilogue
        if activation == "tanh":
            acc = jnp.tanh(acc)
        elif activation == "gelu":
            # TODO(synk): HF BERT uses the exact erf-based GELU; tanh approx here.
            acc = 0.5 * acc * (1.0 + jnp.tanh(
                0.7978845608028654 * (acc + 0.044715 * acc * acc * acc)))
        o_ref[...] = acc.astype(o_ref.dtype)


def linear(x, w, b, activation=None, out_dtype=jnp.bfloat16):
    """y = x @ w + b with optional fused activation.  Tiled + software-pipelined."""
    M, K = x.shape
    N = w.shape[1]
    x = x.astype(jnp.bfloat16)
    w = w.astype(jnp.bfloat16)
    b = b.astype(jnp.float32).reshape(1, N)

    tm = _pick_tile(M, (512, 256, 128, 64, 32, 16, 8))
    tn = _pick_tile(N, (512, 256, 128))
    tk = _pick_tile(K, (512, 256, 128))
    grid = (M // tm, N // tn, K // tk)

    return pl.pallas_call(
        functools.partial(_linear_kernel, activation=activation),
        grid=grid,
        out_shape=jax.ShapeDtypeStruct((M, N), out_dtype),
        in_specs=[
            pl.BlockSpec((tm, tk), lambda i, j, k: (i, k)),
            pl.BlockSpec((tk, tn), lambda i, j, k: (k, j)),
            pl.BlockSpec((1, tn), lambda i, j, k: (0, j)),
        ],
        out_specs=pl.BlockSpec((tm, tn), lambda i, j, k: (i, j)),
        scratch_shapes=[pltpu.VMEM((tm, tn), jnp.float32)],
        compiler_params=pltpu.CompilerParams(
            dimension_semantics=("parallel", "parallel", "arbitrary"),
            vmem_limit_bytes=VMEM_LIMIT),
    )(x, w, b)


# --------------------------------------------------------------------------
# (Add +) LayerNorm, tiled over rows.  Stats in f32.
# --------------------------------------------------------------------------
def _ln_math(x, g_ref, b_ref, o_ref, eps):
    mean = jnp.mean(x, axis=-1, keepdims=True)
    var = jnp.mean(jnp.square(x - mean), axis=-1, keepdims=True)
    y = (x - mean) * jax.lax.rsqrt(var + eps)
    o_ref[...] = (y * g_ref[...] + b_ref[...]).astype(o_ref.dtype)


def _ln_kernel(x_ref, g_ref, b_ref, o_ref, *, eps):
    _ln_math(x_ref[...].astype(jnp.float32), g_ref, b_ref, o_ref, eps)


def _add_ln_kernel(x_ref, r_ref, g_ref, b_ref, o_ref, *, eps):
    xs = x_ref[...].astype(jnp.float32) + r_ref[...].astype(jnp.float32)
    _ln_math(xs, g_ref, b_ref, o_ref, eps)


def layernorm(x, gamma, beta, residual=None, eps=1e-12, out_dtype=jnp.bfloat16):
    """LayerNorm(x [+ residual]).  Row-tiled, parallel grid."""
    M, H = x.shape
    tm = _pick_tile(M, (1024, 512, 256, 128, 64, 32, 16, 8))
    g = gamma.astype(jnp.float32).reshape(1, H)
    b = beta.astype(jnp.float32).reshape(1, H)
    row_spec = pl.BlockSpec((tm, H), lambda i: (i, 0))
    vec_spec = pl.BlockSpec((1, H), lambda i: (0, 0))

    if residual is None:
        kernel = functools.partial(_ln_kernel, eps=eps)
        in_specs = [row_spec, vec_spec, vec_spec]
        args = (x, g, b)
    else:
        kernel = functools.partial(_add_ln_kernel, eps=eps)
        in_specs = [row_spec, row_spec, vec_spec, vec_spec]
        args = (x, residual, g, b)

    return pl.pallas_call(
        kernel,
        grid=(M // tm,),
        out_shape=jax.ShapeDtypeStruct((M, H), out_dtype),
        in_specs=in_specs,
        out_specs=row_spec,
        compiler_params=pltpu.CompilerParams(
            dimension_semantics=("parallel",),
            vmem_limit_bytes=VMEM_LIMIT),
    )(*args)


# --------------------------------------------------------------------------
# Multi-head self-attention, transpose-free.
#   qkv: (B*S, 3H) bf16 (heads live in contiguous column slices)
#   out: (B*S, H)  bf16 (heads concatenated on the last dim -> lane-dense store)
# --------------------------------------------------------------------------
def _attn_kernel(qkv_ref, bias_ref, o_ref, *, num_heads, head_dim, hidden, scale):
    qkv = qkv_ref[...]                       # (S, 3H) bf16, loaded once
    bias = bias_ref[0]                       # (1, S) f32 additive mask
    ctxs = []
    for h in range(num_heads):               # static unroll over heads
        q = qkv[:, h * head_dim:(h + 1) * head_dim]                       # (S, Dh)
        k = qkv[:, hidden + h * head_dim: hidden + (h + 1) * head_dim]
        v = qkv[:, 2 * hidden + h * head_dim: 2 * hidden + (h + 1) * head_dim]
        # scores on the MXU (bf16 in, f32 out); contraction on Dh avoids a transpose.
        s = jax.lax.dot_general(q, k, (((1,), (1,)), ((), ())),
                                preferred_element_type=jnp.float32)
        s = s * scale + bias                                              # (S, S) f32
        m = jnp.max(s, axis=-1, keepdims=True)
        p = jnp.exp(s - m)
        l = jnp.sum(p, axis=-1, keepdims=True)
        ctx = jnp.dot(p.astype(jnp.bfloat16), v,
                      preferred_element_type=jnp.float32)                 # (S, Dh) f32
        ctx = ctx * pl.reciprocal(l, approx=True)                         # EUP slot
        ctxs.append(ctx)
    o_ref[...] = jnp.concatenate(ctxs, axis=-1).astype(o_ref.dtype)       # (S, H)


def mha_attention(qkv, mask_bias, *, batch, seq, num_heads, head_dim, hidden):
    scale = 1.0 / math.sqrt(head_dim)
    return pl.pallas_call(
        functools.partial(_attn_kernel, num_heads=num_heads, head_dim=head_dim,
                          hidden=hidden, scale=scale),
        grid=(batch,),
        out_shape=jax.ShapeDtypeStruct((batch * seq, hidden), jnp.bfloat16),
        in_specs=[
            pl.BlockSpec((seq, 3 * hidden), lambda b: (b, 0)),
            pl.BlockSpec((1, 1, seq), lambda b: (b, 0, 0)),
        ],
        out_specs=pl.BlockSpec((seq, hidden), lambda b: (b, 0)),
        compiler_params=pltpu.CompilerParams(
            dimension_semantics=("parallel",),
            vmem_limit_bytes=VMEM_LIMIT),
    )(qkv, mask_bias)


# --------------------------------------------------------------------------
# Synthetic BERT parameters (deterministic).  Encoder matmul weights stored bf16.
# --------------------------------------------------------------------------
def init_params(key, cfg):
    H, I = cfg["hidden"], cfg["intermediate"]
    keys = iter(jax.random.split(key, 64))

    def w(shape, scale=0.02, dtype=jnp.float32):
        return (scale * jax.random.normal(next(keys), shape)).astype(dtype)

    params = {
        "word_emb": w((cfg["vocab"], H)),
        "pos_emb": w((cfg["max_pos"], H)),
        "type_emb": w((2, H)),
        "emb_ln_g": jnp.ones((H,), jnp.float32),
        "emb_ln_b": jnp.zeros((H,), jnp.float32),
        "layers": [],
        "pool_w": w((H, H)),
        "pool_b": jnp.zeros((H,), jnp.float32),
        "fc_w": w((H, cfg["num_classes"])),
        "fc_b": jnp.zeros((cfg["num_classes"],), jnp.float32),
    }
    for _ in range(cfg["layers"]):
        params["layers"].append({
            # fused Q/K/V projection: read x once, produce a wide lane-dense output
            "wqkv": w((H, 3 * H), dtype=jnp.bfloat16),
            "bqkv": jnp.zeros((3 * H,), jnp.float32),
            "wo": w((H, H), dtype=jnp.bfloat16), "bo": jnp.zeros((H,), jnp.float32),
            "ln1_g": jnp.ones((H,), jnp.float32), "ln1_b": jnp.zeros((H,), jnp.float32),
            "w1": w((H, I), dtype=jnp.bfloat16), "b1": jnp.zeros((I,), jnp.float32),
            "w2": w((I, H), dtype=jnp.bfloat16), "b2": jnp.zeros((H,), jnp.float32),
            "ln2_g": jnp.ones((H,), jnp.float32), "ln2_b": jnp.zeros((H,), jnp.float32),
        })
    return params


# --------------------------------------------------------------------------
# Forward pass: BertClassifier.forward(input_ids, attention_mask) -> logits
# --------------------------------------------------------------------------
def bert_classifier_forward(params, input_ids, attention_mask, cfg):
    B, S = input_ids.shape
    H = cfg["hidden"]
    nH = cfg["heads"]
    Dh = H // nH

    # --- embeddings: gathers are plain-JAX glue; LayerNorm (no residual) in Pallas ---
    word = jnp.take(params["word_emb"], input_ids.reshape(-1), axis=0)       # (B*S, H)
    pos = jnp.tile(params["pos_emb"][:S], (B, 1))                            # (B*S, H)
    tok = jnp.broadcast_to(params["type_emb"][0], (B * S, H))                # (B*S, H)
    x = layernorm(word + pos + tok, params["emb_ln_g"], params["emb_ln_b"])  # bf16

    # additive attention-mask bias: 0 where attended, -1e9 where padded (kept f32)
    mask_bias = ((1.0 - attention_mask.astype(jnp.float32)) * -1e9).reshape(B, 1, S)

    # --- transformer encoder layers ---
    for layer in params["layers"]:
        qkv = linear(x, layer["wqkv"], layer["bqkv"])                        # (B*S, 3H)
        ctx = mha_attention(qkv, mask_bias, batch=B, seq=S,
                            num_heads=nH, head_dim=Dh, hidden=H)             # (B*S, H)
        attn_out = linear(ctx, layer["wo"], layer["bo"])
        x = layernorm(attn_out, layer["ln1_g"], layer["ln1_b"], residual=x)

        ffn = linear(x, layer["w1"], layer["b1"], activation="gelu")
        ffn = linear(ffn, layer["w2"], layer["b2"])
        x = layernorm(ffn, layer["ln2_g"], layer["ln2_b"], residual=x)

    # --- pooler: tanh(W @ h_[CLS] + b), then dropout (identity) + classifier ---
    # Tiny GEMMs (M=B rows, N<=H / num_classes lanes): plain JAX per perf review —
    # a Pallas tile here would be almost entirely masked-lane waste.
    cls = x.reshape(B, S, H)[:, 0, :].astype(jnp.float32)                    # (B, H)
    pooled = jnp.tanh(cls @ params["pool_w"] + params["pool_b"])
    logits = pooled @ params["fc_w"] + params["fc_b"]                        # (B, C)
    return logits


# --------------------------------------------------------------------------
if __name__ == "__main__":
    cfg = dict(vocab=100, hidden=64, heads=2, intermediate=128,
               layers=2, max_pos=16, num_classes=3)
    key = jax.random.PRNGKey(0)
    pkey, dkey = jax.random.split(key)
    params = init_params(pkey, cfg)

    B, S = 2, 8
    input_ids = jax.random.randint(dkey, (B, S), 0, cfg["vocab"], dtype=jnp.int32)
    attention_mask = jnp.ones((B, S), dtype=jnp.int32).at[1, 6:].set(0)

    logits = bert_classifier_forward(params, input_ids, attention_mask, cfg)
    logits = jax.block_until_ready(logits)
    assert logits.shape == (B, cfg["num_classes"])
    assert bool(jnp.all(jnp.isfinite(logits)))
    print("KERNEL_OK")
</pallas_src>

<mosaic_0001>
module attributes {stable_mosaic.version = 11 : i64} {
  func.func @_ln_kernel(%arg0: i32, %arg1: memref<16x64xf32, #tpu.memory_space<vmem>>, %arg2: memref<1x64xf32, #tpu.memory_space<vmem>>, %arg3: memref<1x64xf32, #tpu.memory_space<vmem>>, %arg4: memref<16x64xbf16, #tpu.memory_space<vmem>>) attributes {dimension_semantics = [#tpu.dimension_semantics<parallel>], iteration_bounds = array<i64: 1>, scalar_prefetch = 0 : i64, scratch_operands = 0 : i64, tpu.core_type = #tpu.core_type<tc>, window_params = [{transform_indices = @transform_0, window_bounds = array<i64: 16, 64>}, {pipeline_mode = #tpu.pipeline_mode<synchronous>, transform_indices = @transform_1, window_bounds = array<i64: 1, 64>}, {pipeline_mode = #tpu.pipeline_mode<synchronous>, transform_indices = @transform_2, window_bounds = array<i64: 1, 64>}, {transform_indices = @transform_3, window_bounds = array<i64: 16, 64>}]} {
    %c0 = arith.constant 0 : index
    %c0_0 = arith.constant 0 : index
    %0 = vector.load %arg1[%c0, %c0_0] : memref<16x64xf32, #tpu.memory_space<vmem>>, vector<16x64xf32>
    %cst = arith.constant dense<0.000000e+00> : vector<16xf32>
    %1 = vector.multi_reduction <add>, %0, %cst [1] : vector<16x64xf32> to vector<16xf32>
    %2 = vector.shape_cast %1 : vector<16xf32> to vector<16x1xf32>
    %cst_1 = arith.constant 6.400000e+01 : f32
    %3 = vector.broadcast %cst_1 : f32 to vector<16x1xf32>
    %4 = arith.divf %2, %3 : vector<16x1xf32>
    %5 = vector.broadcast %4 : vector<16x1xf32> to vector<16x64xf32>
    %6 = arith.subf %0, %5 : vector<16x64xf32>
    %7 = arith.mulf %6, %6 : vector<16x64xf32>
    %cst_2 = arith.constant dense<0.000000e+00> : vector<16xf32>
    %8 = vector.multi_reduction <add>, %7, %cst_2 [1] : vector<16x64xf32> to vector<16xf32>
    %9 = vector.shape_cast %8 : vector<16xf32> to vector<16x1xf32>
    %cst_3 = arith.constant 6.400000e+01 : f32
    %10 = vector.broadcast %cst_3 : f32 to vector<16x1xf32>
    %11 = arith.divf %9, %10 : vector<16x1xf32>
    %12 = vector.broadcast %4 : vector<16x1xf32> to vector<16x64xf32>
    %13 = arith.subf %0, %12 : vector<16x64xf32>
    %cst_4 = arith.constant 9.99999996E-13 : f32
    %14 = vector.broadcast %cst_4 : f32 to vector<16x1xf32>
    %15 = arith.addf %11, %14 : vector<16x1xf32>
    %16 = math.rsqrt %15 : vector<16x1xf32>
    %17 = vector.broadcast %16 : vector<16x1xf32> to vector<16x64xf32>
    %18 = arith.mulf %13, %17 : vector<16x64xf32>
    %c0_5 = arith.constant 0 : index
    %c0_6 = arith.constant 0 : index
    %19 = vector.load %arg2[%c0_5, %c0_6] : memref<1x64xf32, #tpu.memory_space<vmem>>, vector<1x64xf32>
    %20 = vector.broadcast %19 : vector<1x64xf32> to vector<16x64xf32>
    %21 = arith.mulf %18, %20 : vector<16x64xf32>
    %c0_7 = arith.constant 0 : index
    %c0_8 = arith.constant 0 : index
    %22 = vector.load %arg3[%c0_7, %c0_8] : memref<1x64xf32, #tpu.memory_space<vmem>>, vector<1x64xf32>
    %23 = vector.broadcast %22 : vector<1x64xf32> to vector<16x64xf32>
    %24 = arith.addf %21, %23 : vector<16x64xf32>
    %25 = arith.truncf %24 : vector<16x64xf32> to vector<16x64xbf16>
    %c0_9 = arith.constant 0 : index
    %c0_10 = arith.constant 0 : index
    %26 = vector.load %arg4[%c0_9, %c0_10] : memref<16x64xbf16, #tpu.memory_space<vmem>>, vector<16x64xbf16>
    tpu.vector_store %arg4[%c0_9, %c0_10], %25 {strides = array<i32>} : memref<16x64xbf16, #tpu.memory_space<vmem>>, vector<16x64xbf16>,
    return
  }
  func.func @transform_0(%arg0: i32) -> (i32, i32) {
    %c0_i32 = arith.constant 0 : i32
    %c0_i32_0 = arith.constant 0 : i32
    return %arg0, %c0_i32 : i32, i32
  }
  func.func @transform_1(%arg0: i32) -> (i32, i32) {
    %c0_i32 = arith.constant 0 : i32
    %c0_i32_0 = arith.constant 0 : i32
    %c0_i32_1 = arith.constant 0 : i32
    return %c0_i32, %c0_i32_0 : i32, i32
  }
  func.func @transform_2(%arg0: i32) -> (i32, i32) {
    %c0_i32 = arith.constant 0 : i32
    %c0_i32_0 = arith.constant 0 : i32
    %c0_i32_1 = arith.constant 0 : i32
    return %c0_i32, %c0_i32_0 : i32, i32
  }
  func.func @transform_3(%arg0: i32) -> (i32, i32) {
    %c0_i32 = arith.constant 0 : i32
    %c0_i32_0 = arith.constant 0 : i32
    return %arg0, %c0_i32 : i32, i32
  }
}

</mosaic_0001>

<llo_original>
// kernel: tpu_custom_call.1
$region0: #{tpu_custom_call.1}
  #allocation0 [shape = 'u32[]', space=smem, size = 0x4, offset = 0x4, fixed_abs, tag = 'smem constant byte address 0x4 - core index']
  #allocation1 [shape = 'u32[144,128]{1,0:T(1,128)}', space=vmem, size = 0x12000, scoped, tag = 'internal scratch']
  %s0 = inlined_call_operand.hbm [shape: f32[16,64], index: 0, kind: input, shape index: {}]
  %s1 = inlined_call_operand.vmem [shape: f32[1,64], index: 1, kind: input, shape index: {}]
  %s2 = inlined_call_operand.vmem [shape: f32[1,64], index: 2, kind: input, shape index: {}]
  %s3 = inlined_call_operand.hbm [shape: bf16[16,64], index: 3, kind: output, shape index: {}]
  %s4 = sld [smem:[#allocation0]]
  $region26: #{tpu_custom_call.1} parent=0
    _
  %s6 = ssub.s32 1, %s4
  %s7 = scalar_select 0, %s6, %s4
  $region1: #{tpu_custom_call.1} parent=0
    #allocation2 [shape = 'u8[8192]{0}', space=vmem, size = 0x2000, scoped, tag = 'input window, operand 0, single buffered']
    #allocation3 [shape = 's32[1]{0}', space=sflag, size = 0x4, scoped, tag = 'scoped memory for tpu_custom_call.1']
    #allocation4 [shape = 's32[1]{0}', space=sflag, size = 0x4, scoped, tag = 'scoped memory for tpu_custom_call.1']
    #allocation5 [shape = 'u8[4096]{0}', space=vmem, size = 0x1000, scoped, tag = 'output window, operand 0, single buffered']
    %8 = vsyncpa [#allocation3], 0
    %9 = vsyncpa [#allocation4], 0
    // Predicated region
    $region2: #{tpu_custom_call.1} parent=1 // pred_check
      _
    $region3: #{tpu_custom_call.1} parent=1 // pred_check_branch
      %11 = sbr.rel (0) target = $region5
    $region4: #{tpu_custom_call.1} parent=1 // pred_region
      %s13 = ssub.s32 256, 256
      %14 = vsyncadd [#allocation3], %s13
      %s15 = sshll.u32 [#allocation2], 4
      %s16 = int_to_ptr.vmem [resolvable:$true] %s15
      %21 = dma.hbm_to_vmem [thread:$0]  %s0, 256, %s16, [#allocation3], 128, 128, 8
    $region5: #{tpu_custom_call.1} parent=1 // pred_fallthru
      _
    // Predicated region
    $region6: #{tpu_custom_call.1} parent=1 // pred_check
      _
    $region7: #{tpu_custom_call.1} parent=1 // pred_check_branch
      %23 = sbr.rel (0) target = $region9
    $region8: #{tpu_custom_call.1} parent=1 // pred_region
      _
    $region9: #{tpu_custom_call.1} parent=1 // pred_fallthru
      _
    // Predicated region
    $region10: #{tpu_custom_call.1} parent=1 // pred_check
      _
    $region11: #{tpu_custom_call.1} parent=1 // pred_check_branch
      %25 = sbr.rel (0) target = $region13
    $region12: #{tpu_custom_call.1} parent=1 // pred_region
      _
    $region13: #{tpu_custom_call.1} parent=1 // pred_fallthru
      _
    // Predicated region
    $region14: #{tpu_custom_call.1} parent=1 // pred_check
      _
    $region15: #{tpu_custom_call.1} parent=1 // pred_check_branch
      %27 = sbr.rel (0) target = $region17
    $region16: #{tpu_custom_call.1} parent=1 // pred_region
      %28 = dma.done [#allocation3], 256
    $region17: #{tpu_custom_call.1} parent=1 // pred_fallthru
      _
    %v29 = vld [vmem:[#allocation2] sm:$0xff]
    %v30 = vld [vmem:[#allocation2 + $0x8] sm:$0xff]
    %vm31 = vcmask 523264
    %v32 = vsel %vm31, %v29, 0.0
    %33 = vadd.xlane.f32.xlu0 %v32
    %v34 = vpop.xlane.xlu0 %33
    %v35 = vsel %vm31, %v30, 0.0
    %36 = vadd.xlane.f32.xlu0 %v35
    %v37 = vpop.xlane.xlu0 %36
    %v38 = vrcp.pop 64.0
    %v39 = vmul.f32 %v34, %v38
    %v40 = vmul.f32 %v37, %v38
    %v41 = vsub.f32 %v29, %v39
    %v42 = vsub.f32 %v30, %v40
    %v43 = vmul.f32 %v41, %v41
    %v44 = vmul.f32 %v42, %v42
    %v45 = vsel %vm31, %v43, 0.0
    %46 = vadd.xlane.f32.xlu0 %v45
    %v47 = vpop.xlane.xlu0 %46
    %v48 = vsel %vm31, %v44, 0.0
    %49 = vadd.xlane.f32.xlu0 %v48
    %v50 = vpop.xlane.xlu0 %49
    %v51 = vmul.f32 %v47, %v38
    %v52 = vmul.f32 %v50, %v38
    %v53 = vadd.f32 %v51, 1e-12
    %v54 = vadd.f32 %v52, 1e-12
    %v55 = vrsqrt.pop %v53
    %v56 = vrsqrt.pop %v54
    %v57 = vmul.f32 %v41, %v55
    %v58 = vmul.f32 %v42, %v56
    %v59 = vld [vmem:[%s1] sm:$0x1]
    %v61 = vlaneseq
    %v62 = vshrl.u32 %v61, 7
    %v63 = vsub.s32 0, %v62
    %v64 = vrot.slane %v59, %v63
    %v66 = vmul.f32 %v57, %v64
    %v67 = vmul.f32 %v58, %v64
    %v68 = vld [vmem:[%s2] sm:$0x1]
    %v70 = vlaneseq
    %v71 = vshrl.u32 %v70, 7
    %v72 = vsub.s32 0, %v71
    %v73 = vrot.slane %v68, %v72
    %v75 = vadd.f32 %v66, %v73
    %v76 = vadd.f32 %v67, %v73
    %v77 = vpack.c.bf16 %v76, %v75
    %v79 = vunpack.c.l.b16 %v77
    %v80 = vunpack.c.h.b16 %v77
    %v81 = vpack.c.b16 %v79, %v79
    %v82 = vpack.c.b16 %v80, %v80
    %vm85 = vcmask 519168
    %86 = vst.msk [vmem:[#allocation5] sm:$0xf] %vm85, %v81
    %87 = vst.msk [vmem:[#allocation5 + $0x4] sm:$0xf] %vm85, %v82
    // Predicated region
    $region18: #{tpu_custom_call.1} parent=1 // pred_check
      _
    $region19: #{tpu_custom_call.1} parent=1 // pred_check_branch
      %89 = sbr.rel (0) target = $region21
    $region20: #{tpu_custom_call.1} parent=1 // pred_region
      %s91 = ssub.s32 128, 128
      %92 = vsyncadd [#allocation4], %s91
      %s93 = sshll.u32 [#allocation5], 4
      %s94 = int_to_ptr.vmem [resolvable:$true] %s93
      %99 = dma.vmem_to_hbm [thread:$0]  %s94, 128, %s3, [#allocation4], 64, 64, 4
    $region21: #{tpu_custom_call.1} parent=1 // pred_fallthru
      _
    // Predicated region
    $region22: #{tpu_custom_call.1} parent=1 // pred_check
      _
    $region23: #{tpu_custom_call.1} parent=1 // pred_check_branch
      %101 = sbr.rel (0) target = $region25
    $region24: #{tpu_custom_call.1} parent=1 // pred_region
      %102 = dma.done [#allocation4], 128
    $region25: #{tpu_custom_call.1} parent=1 // pred_fallthru
      _
    %103 = vsyncpa [#allocation3], 1
    %104 = vsyncpa [#allocation4], 1

</llo_original>
